<compile_context>
chip_gen: v7x
topology: tpu7x:2x2x1
jax: 0.10.0
libtpu: 0.0.40
codegen_flags: <defaults>
</compile_context>

<pallas_src>
import functools
from functools import partial

import jax
import jax.numpy as jnp
from jax.experimental import pallas as pl
from jax.experimental.pallas import tpu as pltpu

LANE = 128
MAX_TILE_ROWS = 1024        # cap on rows of the flattened (B*T_out) axis per step


# --------------------------------------------------------------------------
# small helpers
# --------------------------------------------------------------------------
def _round_up(x, m):
    return (x + m - 1) // m * m


def _pad_axis(a, axis, target):
    amount = target - a.shape[axis]
    if amount == 0:
        return a
    widths = [(0, 0)] * a.ndim
    widths[axis] = (0, amount)
    return jnp.pad(a, widths)


def _pick_tiling(m):
    """tile_m / padded-M for the flattened (B*T_out) row axis.

    Step count first, tile size second: n_steps = cdiv(M, MAX_TILE_ROWS),
    tile_m = round_up(cdiv(M, n_steps), 16).  No forced >=2 steps (grid is a
    sequential loop on 1-TC chips) and at most 15 rows of padding waste.
    """
    n_steps = max(1, -(-m // MAX_TILE_ROWS))
    tile_m = _round_up(-(-m // n_steps), 16)
    return tile_m, n_steps * tile_m


# --------------------------------------------------------------------------
# Capability probe: does this jax/Mosaic accept pipeline_mode=pl.Buffered(1)?
# (narrow, one-off; the real kernel is never wrapped in a broad except)
# --------------------------------------------------------------------------
def _probe_copy_kernel(x_ref, o_ref):
    o_ref[...] = x_ref[...]


@functools.lru_cache(maxsize=None)
def _single_buffer_weights_supported():
    if not hasattr(pl, "Buffered"):
        return False
    try:
        probe = pl.pallas_call(
            _probe_copy_kernel,
            out_shape=jax.ShapeDtypeStruct((8, LANE), jnp.float32),
            grid=(2,),
            in_specs=[pl.BlockSpec((8, LANE), lambda i: (0, 0),
                                   pipeline_mode=pl.Buffered(1))],
            out_specs=pl.BlockSpec((8, LANE), lambda i: (0, 0)),
        )
        jax.block_until_ready(probe(jnp.zeros((8, LANE), jnp.float32)))
        return True
    except Exception:   # capability probe only; real kernel errors are not masked
        return False


# --------------------------------------------------------------------------
# Pallas kernel: full MelResNet stack on one row tile of the flattened slab.
# --------------------------------------------------------------------------
def melresnet_kernel(
    x_ref,        # (tile_m, K_pad)      bf16  im2col'ed input rows
    w_in_ref,     # (K_pad, C_pad)       bf16  conv_in weight (BN scale folded)
    w1_ref,       # (R, C_pad, C_pad)    bf16  ResBlock conv1 weights (scale folded)
    w2_ref,       # (R, C_pad, C_pad)    bf16  ResBlock conv2 weights (scale folded)
    w_out_ref,    # (C_pad, Co_pad)      bf16  conv_out weight
    shifts_ref,   # (2R+1, C_pad)        f32   [b_in; b1[0..R); b2[0..R)]
    bias_out_ref, # (1, Co_pad)          f32   conv_out bias
    o_ref,        # (tile_m, Co_pad)     out dtype
    *, res_blocks,
):
    shifts = shifts_ref[...]                                # (2R+1, C_pad) f32

    # conv_in as ONE lane-dense matmul (contraction K = k*C_in, im2col'ed).
    h = jnp.dot(x_ref[...], w_in_ref[...], preferred_element_type=jnp.float32)
    h = jnp.maximum(h + shifts[0:1, :], 0.0)                # folded BN shift + ReLU

    # Residual blocks: 1x1 -> (+shift) -> ReLU -> 1x1 -> (+shift), + residual.
    for r in range(res_blocks):
        y = jnp.dot(h.astype(jnp.bfloat16), w1_ref[r],
                    preferred_element_type=jnp.float32)
        y = jnp.maximum(y + shifts[1 + r:2 + r, :], 0.0)
        y = jnp.dot(y.astype(jnp.bfloat16), w2_ref[r],
                    preferred_element_type=jnp.float32)
        h = h + y + shifts[1 + res_blocks + r:2 + res_blocks + r, :]

    # conv_out: 1x1 conv with bias; cast once at the store.
    out = jnp.dot(h.astype(jnp.bfloat16), w_out_ref[...],
                  preferred_element_type=jnp.float32)
    o_ref[...] = (out + bias_out_ref[...]).astype(o_ref.dtype)


# --------------------------------------------------------------------------
# One-time parameter packing: fold BN scales into weights (f32) -> pad channel
# dims to multiples of 128 -> cast matmul weights to bf16.  Shifts stay f32.
# --------------------------------------------------------------------------
def pack_params(params, *, pad):
    k = 2 * pad + 1
    c_in = params["w_in"].shape[1]
    c_comp = params["w_in"].shape[2]
    c_out = params["w_out"].shape[1]
    r = params["w1"].shape[0]
    k_in = k * c_in
    kp = _round_up(k_in, LANE)
    cp = _round_up(c_comp, LANE)
    cop = _round_up(c_out, LANE)

    # Column scaling commutes with the matmul: fold BN scales in f32 first.
    w_in = (params["w_in"] * params["s_in"]).reshape(k_in, c_comp)          # tap-major
    w1 = params["w1"] * params["s1"]                                        # (R, C, C)
    w2 = params["w2"] * params["s2"]                                        # (R, C, C)

    # Consolidate all C_comp-wide additive shifts into one operand.
    shifts = jnp.concatenate(
        [params["b_in"].reshape(1, c_comp),
         params["b1"].reshape(r, c_comp),
         params["b2"].reshape(r, c_comp)], axis=0)                          # (2R+1, C)

    packed = {
        "w_in": _pad_axis(_pad_axis(w_in, 0, kp), 1, cp).astype(jnp.bfloat16),
        "w1": _pad_axis(_pad_axis(w1, 1, cp), 2, cp).astype(jnp.bfloat16),
        "w2": _pad_axis(_pad_axis(w2, 1, cp), 2, cp).astype(jnp.bfloat16),
        "w_out": _pad_axis(_pad_axis(params["w_out"], 0, cp), 1, cop).astype(jnp.bfloat16),
        "shifts": _pad_axis(shifts, 1, cp).astype(jnp.float32),
        "b_out": _pad_axis(params["b_out"], 1, cop).astype(jnp.float32),
    }
    dims = dict(k=k, c_in=c_in, c_comp=c_comp, c_out=c_out,
                k_pad=kp, c_pad=cp, co_pad=cop, res_blocks=r)
    return packed, dims


# --------------------------------------------------------------------------
# pallas_call plumbing
# --------------------------------------------------------------------------
def _pallas_forward(x2d, packed, dims, tile_m, *, out_dtype, single_buffer):
    m_pad, k_pad = x2d.shape
    cp, cop, r = dims["c_pad"], dims["co_pad"], dims["res_blocks"]
    grid = (m_pad // tile_m,)
    out_itemsize = jnp.dtype(out_dtype).itemsize

    if single_buffer:
        # Grid-invariant operands: constant index_map + single buffer
        # (no 2x weight VMEM, no redundant per-step DMA).
        def const_spec(shape):
            return pl.BlockSpec(shape, lambda i: (0,) * len(shape),
                                pipeline_mode=pl.Buffered(1))
    else:
        def const_spec(shape):
            return pl.BlockSpec(shape, lambda i: (0,) * len(shape))

    # VMEM budget from the actual footprint (not a fixed constant).
    weight_bytes = sum(int(v.size) * v.dtype.itemsize for v in packed.values())
    wbuf = 1 if single_buffer else 2
    act_bytes = 2 * tile_m * k_pad * 2            # double-buffered bf16 input tile
    out_bytes = 2 * tile_m * cop * out_itemsize   # double-buffered output tile
    footprint = wbuf * weight_bytes + act_bytes + out_bytes
    vmem_limit = int(min(max(footprint * 5 // 4 + (4 << 20), 32 << 20), 100 << 20))

    flops = 2 * m_pad * (k_pad * cp + 2 * r * cp * cp + cp * cop)
    bytes_accessed = int(x2d.size) * 2 + int(weight_bytes) + m_pad * cop * out_itemsize

    return pl.pallas_call(
        partial(melresnet_kernel, res_blocks=r),
        out_shape=jax.ShapeDtypeStruct((m_pad, cop), out_dtype),
        grid=grid,
        in_specs=[
            pl.BlockSpec((tile_m, k_pad), lambda i: (i, 0)),
            const_spec(packed["w_in"].shape),
            const_spec(packed["w1"].shape),
            const_spec(packed["w2"].shape),
            const_spec(packed["w_out"].shape),
            const_spec(packed["shifts"].shape),
            const_spec(packed["b_out"].shape),
        ],
        out_specs=pl.BlockSpec((tile_m, cop), lambda i: (i, 0)),
        compiler_params=pltpu.CompilerParams(
            dimension_semantics=("parallel",),
            vmem_limit_bytes=vmem_limit,
        ),
        cost_estimate=pl.CostEstimate(
            flops=int(flops), transcendentals=0,
            bytes_accessed=int(bytes_accessed)),
    )(
        x2d,
        packed["w_in"], packed["w1"], packed["w2"], packed["w_out"],
        packed["shifts"], packed["b_out"],
    )


def make_mel_resnet_forward(params, *, pad, out_dtype=jnp.float32):
    """Returns a jitted PyTorch-compatible forward: (B, C_in, T) -> (B, C_out, T-2*pad)."""
    packed, dims = pack_params(params, pad=pad)               # one-time prep
    single_buffer = _single_buffer_weights_supported()        # one-time probe

    @jax.jit
    def forward(x_nct):
        B, c_in, T = x_nct.shape
        k = dims["k"]
        T_out = T - k + 1
        m = B * T_out

        # im2col for conv_in: (B, T_out, k*C_in), tap-major last dim (matches
        # the (k, C_in, C_comp) -> (k*C_in, C_comp) weight flatten).  Fused
        # with the pad + bf16 cast under this jit (no extra HBM passes).
        x_tc = jnp.transpose(x_nct, (0, 2, 1))                              # (B, T, C_in)
        cols = jnp.concatenate(
            [x_tc[:, dk:dk + T_out, :] for dk in range(k)], axis=-1)        # (B, T_out, k*C_in)
        x2d = cols.reshape(m, k * c_in)

        tile_m, m_pad = _pick_tiling(m)
        x2d = _pad_axis(_pad_axis(x2d, 1, dims["k_pad"]), 0, m_pad)
        x2d = x2d.astype(jnp.bfloat16)

        out2d = _pallas_forward(x2d, packed, dims, tile_m,
                                out_dtype=out_dtype, single_buffer=single_buffer)

        out = out2d[:m, :dims["c_out"]].reshape(B, T_out, dims["c_out"])
        return jnp.transpose(out, (0, 2, 1))                  # back to (B, C_out, T_out)

    return forward


# --------------------------------------------------------------------------
# Pure-JAX f32 reference (PyTorch semantics) for correctness checking.
# --------------------------------------------------------------------------
def mel_resnet_reference(x_nct, params, *, pad):
    k_size = 2 * pad + 1
    B, C_in, T = x_nct.shape
    T_out = T - k_size + 1
    x = jnp.transpose(x_nct, (0, 2, 1))
    C_comp = params["w_in"].shape[2]
    h = jnp.zeros((B, T_out, C_comp), jnp.float32)
    for dk in range(k_size):
        h = h + jnp.einsum("btc,cd->btd", x[:, dk:dk + T_out, :], params["w_in"][dk])
    h = jnp.maximum(h * params["s_in"] + params["b_in"], 0.0)
    for r in range(params["w1"].shape[0]):
        y = jnp.einsum("btc,cd->btd", h, params["w1"][r])
        y = jnp.maximum(y * params["s1"][r] + params["b1"][r], 0.0)
        y = jnp.einsum("btc,cd->btd", y, params["w2"][r])
        y = y * params["s2"][r] + params["b2"][r]
        h = h + y
    out = jnp.einsum("btc,cd->btd", h, params["w_out"]) + params["b_out"]
    return jnp.transpose(out, (0, 2, 1))


# --------------------------------------------------------------------------
# Deterministic synthetic parameters (BatchNorm folded to eval-mode scale/shift).
# PyTorch Conv1d weight is (out_ch, in_ch, k); stored here channels-last as
# (k, in_ch, out_ch).
# --------------------------------------------------------------------------
def init_params(key, *, res_blocks, in_size, compute_size, res_out_size, pad):
    k_size = 2 * pad + 1
    eps = 1e-5
    keys = iter(jax.random.split(key, 8 + 8 * res_blocks))

    def bn_fold(shape):
        gamma = 1.0 + 0.1 * jax.random.normal(next(keys), shape, jnp.float32)
        beta = 0.1 * jax.random.normal(next(keys), shape, jnp.float32)
        mean = 0.1 * jax.random.normal(next(keys), shape, jnp.float32)
        var = 1.0 + 0.5 * jax.random.uniform(next(keys), shape, jnp.float32)
        s = gamma * jax.lax.rsqrt(var + eps)
        b = beta - mean * s
        return s, b

    params = {}
    params["w_in"] = 0.1 * jax.random.normal(
        next(keys), (k_size, in_size, compute_size), jnp.float32)
    params["s_in"], params["b_in"] = bn_fold((1, compute_size))

    params["w1"] = 0.1 * jax.random.normal(
        next(keys), (res_blocks, compute_size, compute_size), jnp.float32)
    params["s1"], params["b1"] = bn_fold((res_blocks, 1, compute_size))
    params["w2"] = 0.1 * jax.random.normal(
        next(keys), (res_blocks, compute_size, compute_size), jnp.float32)
    params["s2"], params["b2"] = bn_fold((res_blocks, 1, compute_size))

    params["w_out"] = 0.1 * jax.random.normal(
        next(keys), (compute_size, res_out_size), jnp.float32)
    params["b_out"] = 0.1 * jax.random.normal(
        next(keys), (1, res_out_size), jnp.float32)
    return params


if __name__ == "__main__":
    # Small MelResNet config: res_blocks=3, in_size=16, compute_size=32,
    # res_out_size=24, pad=2 (k_size=5).  Output time = T - 2*pad = 16.
    res_blocks, in_size, compute_size, res_out_size, pad = 3, 16, 32, 24, 2
    B, T = 2, 20

    key = jax.random.PRNGKey(0)
    kp, kx = jax.random.split(key)
    params = init_params(kp, res_blocks=res_blocks, in_size=in_size,
                         compute_size=compute_size, res_out_size=res_out_size,
                         pad=pad)
    x = jax.random.normal(kx, (B, in_size, T), jnp.float32)   # NCT like PyTorch

    forward = make_mel_resnet_forward(params, pad=pad)
    out = jax.block_until_ready(forward(x))

    ref = mel_resnet_reference(x, params, pad=pad)
    assert out.shape == (B, res_out_size, T - 2 * pad), out.shape
    # Matmul operands are bf16 inside the kernel; compare with a bf16-appropriate
    # tolerance relative to the reference magnitude.
    max_err = float(jnp.max(jnp.abs(out - ref)))
    scale = float(jnp.max(jnp.abs(ref)))
    assert max_err <= 5e-2 * max(scale, 1.0), (max_err, scale)

    print("KERNEL_OK")
</pallas_src>

<mosaic_0001>
module attributes {stable_mosaic.version = 11 : i64} {
  func.func @_probe_copy_kernel(%arg0: i32, %arg1: memref<8x128xf32, #tpu.memory_space<vmem>>, %arg2: memref<8x128xf32, #tpu.memory_space<vmem>>) attributes {dimension_semantics = [#tpu.dimension_semantics<arbitrary>], iteration_bounds = array<i64: 2>, scalar_prefetch = 0 : i64, scratch_operands = 0 : i64, tpu.core_type = #tpu.core_type<tc>, window_params = [{pipeline_mode = #tpu.pipeline_mode<synchronous>, transform_indices = @transform_0, window_bounds = array<i64: 8, 128>}, {pipeline_mode = #tpu.pipeline_mode<synchronous>, transform_indices = @transform_1, window_bounds = array<i64: 8, 128>}]} {
    %c0 = arith.constant 0 : index
    %c0_0 = arith.constant 0 : index
    %0 = vector.load %arg1[%c0, %c0_0] : memref<8x128xf32, #tpu.memory_space<vmem>>, vector<8x128xf32>
    %c0_1 = arith.constant 0 : index
    %c0_2 = arith.constant 0 : index
    %1 = vector.load %arg2[%c0_1, %c0_2] : memref<8x128xf32, #tpu.memory_space<vmem>>, vector<8x128xf32>
    tpu.vector_store %arg2[%c0_1, %c0_2], %0 {strides = array<i32>} : memref<8x128xf32, #tpu.memory_space<vmem>>, vector<8x128xf32>,
    return
  }
  func.func @transform_0(%arg0: i32) -> (i32, i32) {
    %c0_i32 = arith.constant 0 : i32
    %c0_i32_0 = arith.constant 0 : i32
    %c0_i32_1 = arith.constant 0 : i32
    return %c0_i32, %c0_i32_0 : i32, i32
  }
  func.func @transform_1(%arg0: i32) -> (i32, i32) {
    %c0_i32 = arith.constant 0 : i32
    %c0_i32_0 = arith.constant 0 : i32
    %c0_i32_1 = arith.constant 0 : i32
    return %c0_i32, %c0_i32_0 : i32, i32
  }
}

module attributes {stable_mosaic.version = 11 : i64} {
  func.func @melresnet_kernel(%arg0: i32, %arg1: memref<32x128xbf16, #tpu.memory_space<vmem>>, %arg2: memref<128x128xbf16, #tpu.memory_space<vmem>>, %arg3: memref<3x128x128xbf16, #tpu.memory_space<vmem>>, %arg4: memref<3x128x128xbf16, #tpu.memory_space<vmem>>, %arg5: memref<128x128xbf16, #tpu.memory_space<vmem>>, %arg6: memref<7x128xf32, #tpu.memory_space<vmem>>, %arg7: memref<1x128xf32, #tpu.memory_space<vmem>>, %arg8: memref<32x128xf32, #tpu.memory_space<vmem>>) attributes {dimension_semantics = [#tpu.dimension_semantics<parallel>], iteration_bounds = array<i64: 1>, scalar_prefetch = 0 : i64, scratch_operands = 0 : i64, tpu.core_type = #tpu.core_type<tc>, window_params = [{transform_indices = @transform_0, window_bounds = array<i64: 32, 128>}, {pipeline_mode = #tpu.pipeline_mode<synchronous>, transform_indices = @transform_1, window_bounds = array<i64: 128, 128>}, {pipeline_mode = #tpu.pipeline_mode<synchronous>, transform_indices = @transform_2, window_bounds = array<i64: 3, 128, 128>}, {pipeline_mode = #tpu.pipeline_mode<synchronous>, transform_indices = @transform_3, window_bounds = array<i64: 3, 128, 128>}, {pipeline_mode = #tpu.pipeline_mode<synchronous>, transform_indices = @transform_4, window_bounds = array<i64: 128, 128>}, {pipeline_mode = #tpu.pipeline_mode<synchronous>, transform_indices = @transform_5, window_bounds = array<i64: 7, 128>}, {pipeline_mode = #tpu.pipeline_mode<synchronous>, transform_indices = @transform_6, window_bounds = array<i64: 1, 128>}, {transform_indices = @transform_7, window_bounds = array<i64: 32, 128>}]} {
    %c0 = arith.constant 0 : index
    %c0_0 = arith.constant 0 : index
    %0 = vector.load %arg6[%c0, %c0_0] : memref<7x128xf32, #tpu.memory_space<vmem>>, vector<7x128xf32>
    %c0_1 = arith.constant 0 : index
    %c0_2 = arith.constant 0 : index
    %1 = vector.load %arg1[%c0_1, %c0_2] : memref<32x128xbf16, #tpu.memory_space<vmem>>, vector<32x128xbf16>
    %c0_3 = arith.constant 0 : index
    %c0_4 = arith.constant 0 : index
    %2 = vector.load %arg2[%c0_3, %c0_4] : memref<128x128xbf16, #tpu.memory_space<vmem>>, vector<128x128xbf16>
    %cst = arith.constant dense<0.000000e+00> : vector<32x128xf32>
    %3 = tpu.matmul %1, %2, %cst {dimension_numbers = #tpu.dot_dimension_numbers<[1], [0], [0], [1], [0, 0, 1, 1], [], []>} : vector<32x128xbf16>, vector<128x128xbf16>, vector<32x128xf32> -> vector<32x128xf32>
    %4 = vector.extract_strided_slice %0 {offsets = [0, 0], sizes = [1, 128], strides = [1, 1]} : vector<7x128xf32> to vector<1x128xf32>
    %5 = vector.broadcast %4 : vector<1x128xf32> to vector<32x128xf32>
    %6 = arith.addf %3, %5 : vector<32x128xf32>
    %cst_5 = arith.constant 0.000000e+00 : f32
    %7 = vector.broadcast %cst_5 : f32 to vector<32x128xf32>
    %8 = arith.maximumf %6, %7 : vector<32x128xf32>
    %9 = arith.truncf %8 : vector<32x128xf32> to vector<32x128xbf16>
    %c0_6 = arith.constant 0 : index
    %c0_7 = arith.constant 0 : index
    %c0_8 = arith.constant 0 : index
    %10 = vector.load %arg3[%c0_6, %c0_7, %c0_8] : memref<3x128x128xbf16, #tpu.memory_space<vmem>>, vector<1x128x128xbf16>
    %11 = vector.shape_cast %10 : vector<1x128x128xbf16> to vector<128x128xbf16>
    %cst_9 = arith.constant dense<0.000000e+00> : vector<32x128xf32>
    %12 = tpu.matmul %9, %11, %cst_9 {dimension_numbers = #tpu.dot_dimension_numbers<[1], [0], [0], [1], [0, 0, 1, 1], [], []>} : vector<32x128xbf16>, vector<128x128xbf16>, vector<32x128xf32> -> vector<32x128xf32>
    %13 = vector.extract_strided_slice %0 {offsets = [1, 0], sizes = [1, 128], strides = [1, 1]} : vector<7x128xf32> to vector<1x128xf32>
    %14 = vector.broadcast %13 : vector<1x128xf32> to vector<32x128xf32>
    %15 = arith.addf %12, %14 : vector<32x128xf32>
    %cst_10 = arith.constant 0.000000e+00 : f32
    %16 = vector.broadcast %cst_10 : f32 to vector<32x128xf32>
    %17 = arith.maximumf %15, %16 : vector<32x128xf32>
    %18 = arith.truncf %17 : vector<32x128xf32> to vector<32x128xbf16>
    %c0_11 = arith.constant 0 : index
    %c0_12 = arith.constant 0 : index
    %c0_13 = arith.constant 0 : index
    %19 = vector.load %arg4[%c0_11, %c0_12, %c0_13] : memref<3x128x128xbf16, #tpu.memory_space<vmem>>, vector<1x128x128xbf16>
    %20 = vector.shape_cast %19 : vector<1x128x128xbf16> to vector<128x128xbf16>
    %cst_14 = arith.constant dense<0.000000e+00> : vector<32x128xf32>
    %21 = tpu.matmul %18, %20, %cst_14 {dimension_numbers = #tpu.dot_dimension_numbers<[1], [0], [0], [1], [0, 0, 1, 1], [], []>} : vector<32x128xbf16>, vector<128x128xbf16>, vector<32x128xf32> -> vector<32x128xf32>
    %22 = arith.addf %8, %21 : vector<32x128xf32>
    %23 = vector.extract_strided_slice %0 {offsets = [4, 0], sizes = [1, 128], strides = [1, 1]} : vector<7x128xf32> to vector<1x128xf32>
    %24 = vector.broadcast %23 : vector<1x128xf32> to vector<32x128xf32>
    %25 = arith.addf %22, %24 : vector<32x128xf32>
    %26 = arith.truncf %25 : vector<32x128xf32> to vector<32x128xbf16>
    %c1 = arith.constant 1 : index
    %c0_15 = arith.constant 0 : index
    %c0_16 = arith.constant 0 : index
    %27 = vector.load %arg3[%c1, %c0_15, %c0_16] : memref<3x128x128xbf16, #tpu.memory_space<vmem>>, vector<1x128x128xbf16>
    %28 = vector.shape_cast %27 : vector<1x128x128xbf16> to vector<128x128xbf16>
    %cst_17 = arith.constant dense<0.000000e+00> : vector<32x128xf32>
    %29 = tpu.matmul %26, %28, %cst_17 {dimension_numbers = #tpu.dot_dimension_numbers<[1], [0], [0], [1], [0, 0, 1, 1], [], []>} : vector<32x128xbf16>, vector<128x128xbf16>, vector<32x128xf32> -> vector<32x128xf32>
    %30 = vector.extract_strided_slice %0 {offsets = [2, 0], sizes = [1, 128], strides = [1, 1]} : vector<7x128xf32> to vector<1x128xf32>
    %31 = vector.broadcast %30 : vector<1x128xf32> to vector<32x128xf32>
    %32 = arith.addf %29, %31 : vector<32x128xf32>
    %cst_18 = arith.constant 0.000000e+00 : f32
    %33 = vector.broadcast %cst_18 : f32 to vector<32x128xf32>
    %34 = arith.maximumf %32, %33 : vector<32x128xf32>
    %35 = arith.truncf %34 : vector<32x128xf32> to vector<32x128xbf16>
    %c1_19 = arith.constant 1 : index
    %c0_20 = arith.constant 0 : index
    %c0_21 = arith.constant 0 : index
    %36 = vector.load %arg4[%c1_19, %c0_20, %c0_21] : memref<3x128x128xbf16, #tpu.memory_space<vmem>>, vector<1x128x128xbf16>
    %37 = vector.shape_cast %36 : vector<1x128x128xbf16> to vector<128x128xbf16>
    %cst_22 = arith.constant dense<0.000000e+00> : vector<32x128xf32>
    %38 = tpu.matmul %35, %37, %cst_22 {dimension_numbers = #tpu.dot_dimension_numbers<[1], [0], [0], [1], [0, 0, 1, 1], [], []>} : vector<32x128xbf16>, vector<128x128xbf16>, vector<32x128xf32> -> vector<32x128xf32>
    %39 = arith.addf %25, %38 : vector<32x128xf32>
    %40 = vector.extract_strided_slice %0 {offsets = [5, 0], sizes = [1, 128], strides = [1, 1]} : vector<7x128xf32> to vector<1x128xf32>
    %41 = vector.broadcast %40 : vector<1x128xf32> to vector<32x128xf32>
    %42 = arith.addf %39, %41 : vector<32x128xf32>
    %43 = arith.truncf %42 : vector<32x128xf32> to vector<32x128xbf16>
    %c2 = arith.constant 2 : index
    %c0_23 = arith.constant 0 : index
    %c0_24 = arith.constant 0 : index
    %44 = vector.load %arg3[%c2, %c0_23, %c0_24] : memref<3x128x128xbf16, #tpu.memory_space<vmem>>, vector<1x128x128xbf16>
    %45 = vector.shape_cast %44 : vector<1x128x128xbf16> to vector<128x128xbf16>
    %cst_25 = arith.constant dense<0.000000e+00> : vector<32x128xf32>
    %46 = tpu.matmul %43, %45, %cst_25 {dimension_numbers = #tpu.dot_dimension_numbers<[1], [0], [0], [1], [0, 0, 1, 1], [], []>} : vector<32x128xbf16>, vector<128x128xbf16>, vector<32x128xf32> -> vector<32x128xf32>
    %47 = vector.extract_strided_slice %0 {offsets = [3, 0], sizes = [1, 128], strides = [1, 1]} : vector<7x128xf32> to vector<1x128xf32>
    %48 = vector.broadcast %47 : vector<1x128xf32> to vector<32x128xf32>
    %49 = arith.addf %46, %48 : vector<32x128xf32>
    %cst_26 = arith.constant 0.000000e+00 : f32
    %50 = vector.broadcast %cst_26 : f32 to vector<32x128xf32>
    %51 = arith.maximumf %49, %50 : vector<32x128xf32>
    %52 = arith.truncf %51 : vector<32x128xf32> to vector<32x128xbf16>
    %c2_27 = arith.constant 2 : index
    %c0_28 = arith.constant 0 : index
    %c0_29 = arith.constant 0 : index
    %53 = vector.load %arg4[%c2_27, %c0_28, %c0_29] : memref<3x128x128xbf16, #tpu.memory_space<vmem>>, vector<1x128x128xbf16>
    %54 = vector.shape_cast %53 : vector<1x128x128xbf16> to vector<128x128xbf16>
    %cst_30 = arith.constant dense<0.000000e+00> : vector<32x128xf32>
    %55 = tpu.matmul %52, %54, %cst_30 {dimension_numbers = #tpu.dot_dimension_numbers<[1], [0], [0], [1], [0, 0, 1, 1], [], []>} : vector<32x128xbf16>, vector<128x128xbf16>, vector<32x128xf32> -> vector<32x128xf32>
    %56 = arith.addf %42, %55 : vector<32x128xf32>
    %57 = vector.extract_strided_slice %0 {offsets = [6, 0], sizes = [1, 128], strides = [1, 1]} : vector<7x128xf32> to vector<1x128xf32>
    %58 = vector.broadcast %57 : vector<1x128xf32> to vector<32x128xf32>
    %59 = arith.addf %56, %58 : vector<32x128xf32>
    %60 = arith.truncf %59 : vector<32x128xf32> to vector<32x128xbf16>
    %c0_31 = arith.constant 0 : index
    %c0_32 = arith.constant 0 : index
    %61 = vector.load %arg5[%c0_31, %c0_32] : memref<128x128xbf16, #tpu.memory_space<vmem>>, vector<128x128xbf16>
    %cst_33 = arith.constant dense<0.000000e+00> : vector<32x128xf32>
    %62 = tpu.matmul %60, %61, %cst_33 {dimension_numbers = #tpu.dot_dimension_numbers<[1], [0], [0], [1], [0, 0, 1, 1], [], []>} : vector<32x128xbf16>, vector<128x128xbf16>, vector<32x128xf32> -> vector<32x128xf32>
    %c0_34 = arith.constant 0 : index
    %c0_35 = arith.constant 0 : index
    %63 = vector.load %arg7[%c0_34, %c0_35] : memref<1x128xf32, #tpu.memory_space<vmem>>, vector<1x128xf32>
    %64 = vector.broadcast %63 : vector<1x128xf32> to vector<32x128xf32>
    %65 = arith.addf %62, %64 : vector<32x128xf32>
    %c0_36 = arith.constant 0 : index
    %c0_37 = arith.constant 0 : index
    %66 = vector.load %arg8[%c0_36, %c0_37] : memref<32x128xf32, #tpu.memory_space<vmem>>, vector<32x128xf32>
    tpu.vector_store %arg8[%c0_36, %c0_37], %65 {strides = array<i32>} : memref<32x128xf32, #tpu.memory_space<vmem>>, vector<32x128xf32>,
    return
  }
  func.func @transform_0(%arg0: i32) -> (i32, i32) {
    %c0_i32 = arith.constant 0 : i32
    %c0_i32_0 = arith.constant 0 : i32
    return %arg0, %c0_i32 : i32, i32
  }
  func.func @transform_1(%arg0: i32) -> (i32, i32) {
    %c0_i32 = arith.constant 0 : i32
    %c0_i32_0 = arith.constant 0 : i32
    %c0_i32_1 = arith.constant 0 : i32
    return %c0_i32, %c0_i32_0 : i32, i32
  }
  func.func @transform_2(%arg0: i32) -> (i32, i32, i32) {
    %c0_i32 = arith.constant 0 : i32
    %c0_i32_0 = arith.constant 0 : i32
    %c0_i32_1 = arith.constant 0 : i32
    %c0_i32_2 = arith.constant 0 : i32
    return %c0_i32, %c0_i32_0, %c0_i32_1 : i32, i32, i32
  }
  func.func @transform_3(%arg0: i32) -> (i32, i32, i32) {
    %c0_i32 = arith.constant 0 : i32
    %c0_i32_0 = arith.constant 0 : i32
    %c0_i32_1 = arith.constant 0 : i32
    %c0_i32_2 = arith.constant 0 : i32
    return %c0_i32, %c0_i32_0, %c0_i32_1 : i32, i32, i32
  }
  func.func @transform_4(%arg0: i32) -> (i32, i32) {
    %c0_i32 = arith.constant 0 : i32
    %c0_i32_0 = arith.constant 0 : i32
    %c0_i32_1 = arith.constant 0 : i32
    return %c0_i32, %c0_i32_0 : i32, i32
  }
  func.func @transform_5(%arg0: i32) -> (i32, i32) {
    %c0_i32 = arith.constant 0 : i32
    %c0_i32_0 = arith.constant 0 : i32
    %c0_i32_1 = arith.constant 0 : i32
    return %c0_i32, %c0_i32_0 : i32, i32
  }
  func.func @transform_6(%arg0: i32) -> (i32, i32) {
    %c0_i32 = arith.constant 0 : i32
    %c0_i32_0 = arith.constant 0 : i32
    %c0_i32_1 = arith.constant 0 : i32
    return %c0_i32, %c0_i32_0 : i32, i32
  }
  func.func @transform_7(%arg0: i32) -> (i32, i32) {
    %c0_i32 = arith.constant 0 : i32
    %c0_i32_0 = arith.constant 0 : i32
    return %arg0, %c0_i32 : i32, i32
  }
}

</mosaic_0001>

<llo_original>
// kernel: tpu_custom_call.1
$region0: #{tpu_custom_call.1}
  #allocation0 [shape = 'u32[]', space=smem, size = 0x4, offset = 0x4, fixed_abs, tag = 'smem constant byte address 0x4 - core index']
  #allocation1 [shape = 'u32[144,128]{1,0:T(1,128)}', space=vmem, size = 0x12000, scoped, tag = 'internal scratch']
  %s0 = inlined_call_operand.hbm [shape: f32[8,128], index: 0, kind: input, shape index: {}]
  %s1 = inlined_call_operand.hbm [shape: f32[8,128], index: 1, kind: output, shape index: {}]
  %s2 = sld [smem:[#allocation0]]
  $region41: #{tpu_custom_call.1} parent=0
    _
  %s4 = ssub.s32 1, %s2
  %s5 = scalar_select 0, %s4, %s2
  $region1: #{tpu_custom_call.1} parent=0
    #allocation2 [shape = 'u8[4096]{0}', space=vmem, size = 0x1000, scoped, tag = 'input window, operand 0, single buffered']
    #allocation3 [shape = 's32[2]{0}', space=sflag, size = 0x8, scoped, tag = 'scoped memory for tpu_custom_call.1']
    #allocation4 [shape = 's32[2]{0}', space=sflag, size = 0x8, scoped, tag = 'scoped memory for tpu_custom_call.1']
    #allocation5 [shape = 'u8[4096]{0}', space=vmem, size = 0x1000, scoped, tag = 'output window, operand 0, single buffered']
    %6 = vsyncpa [#allocation3], 0
    %7 = vsyncpa [#allocation4], 0
    loop: start=0, step=1, limit=4
    $region2: #{tpu_custom_call.1} parent=1 // loop_pre_header
      _
    $region3: #{tpu_custom_call.1} parent=1 // loop_header
      %s9 = sphi 0, %s13
      %p10 = scmp.ge.s32.totalorder %s9, 4
      %s17 = sphi 0, %s17
      %s19 = sphi 0, %s17
      %s20 = sphi 0, %s19
      %s34 = sphi 0, %s20
      %s38 = sphi 0, %s38
      %s40 = sphi 0, %s38
      %s41 = sphi 0, %s40
      %s55 = sphi 0, %s41
    $region4: #{tpu_custom_call.1} parent=1 // loop_header_branch
      %12 = sbr.rel (%p10) target = $region8
    $region5: #{tpu_custom_call.1} parent=1 // loop_body
      %s14 = ssub.s32 %s9, 1
      %s15 = ssub.s32 %s9, 2
      %s16 = sadd.s32 %s9, 1
      %s18 = sadd.s32 %s17, 1
      %p21 = scmp.eq.s32.totalorder %s9, 1
      %p22 = scmp.ne.s32.totalorder %s17, %s19
      %p23 = scmp.eq.s32.totalorder %s9, 0
      %p24 = por %p22, %p23
      %p25 = scmp.ne.s32.totalorder %s17, %s19
      %p26 = scmp.eq.s32.totalorder %s14, 1
      %p27 = por %p25, %p26
      %p28 = scmp.ne.s32.totalorder %s19, %s20
      %p29 = scmp.eq.s32.totalorder %s14, 0
      %p30 = por %p28, %p29
      %p31 = scmp.ne.s32.totalorder %s19, %s20
      %p32 = scmp.eq.s32.totalorder %s15, 1
      %p33 = por %p31, %p32
      %p35 = scmp.ne.s32.totalorder %s20, %s34
      %p36 = scmp.eq.s32.totalorder %s15, 0
      %p37 = por %p35, %p36
      %s39 = sadd.s32 %s38, 1
      %p42 = scmp.eq.s32.totalorder %s9, 1
      %p43 = scmp.ne.s32.totalorder %s38, %s40
      %p44 = scmp.eq.s32.totalorder %s9, 0
      %p45 = por %p43, %p44
      %p46 = scmp.ne.s32.totalorder %s38, %s40
      %p47 = scmp.eq.s32.totalorder %s14, 1
      %p48 = por %p46, %p47
      %p49 = scmp.ne.s32.totalorder %s40, %s41
      %p50 = scmp.eq.s32.totalorder %s14, 0
      %p51 = por %p49, %p50
      %p52 = scmp.ne.s32.totalorder %s40, %s41
      %p53 = scmp.eq.s32.totalorder %s15, 1
      %p54 = por %p52, %p53
      %p56 = scmp.ne.s32.totalorder %s41, %s55
      %p57 = scmp.eq.s32.totalorder %s15, 0
      %p58 = por %p56, %p57
      %p59 = scmp.le.s32.totalorder 1, %s9
      %p60 = scmp.lt.s32.totalorder %s9, 3
      %p61 = pnand %p59, %p60
      %p62 = pneg %p61
      // Predicated region
      $region9: #{tpu_custom_call.1} parent=5 // pred_check
        _
      $region10: #{tpu_custom_call.1} parent=5 // pred_check_branch
        %64 = sbr.rel (%p61) target = $region12
      $region11: #{tpu_custom_call.1} parent=5 // pred_region
        %s65 = ssub.s32 %s9, 1
        // Predicated region
        $region13: #{tpu_custom_call.1} parent=11 // pred_check
          %p66 = pneg %p30
        $region14: #{tpu_custom_call.1} parent=11 // pred_check_branch
          %68 = sbr.rel (%p66) target = $region16
        $region15: #{tpu_custom_call.1} parent=11 // pred_region
          %s70 = ssub.s32 128, 128
          %71 = vsyncadd [#allocation3], %s70
          %s73 = sshll.u32 [#allocation2], 4
          %s74 = int_to_ptr.vmem [resolvable:$true] %s73
          %76 = dma.hbm_to_vmem [thread:$0]  %s0, 128, %s74, [#allocation3]
        $region16: #{tpu_custom_call.1} parent=11 // pred_fallthru
          _
      $region12: #{tpu_custom_call.1} parent=5 // pred_fallthru
        _
      %p77 = scmp.lt.s32.totalorder %s9, 2
      // Predicated region
      $region17: #{tpu_custom_call.1} parent=5 // pred_check
        %p78 = pneg %p77
      $region18: #{tpu_custom_call.1} parent=5 // pred_check_branch
        %80 = sbr.rel (%p78) target = $region20
      $region19: #{tpu_custom_call.1} parent=5 // pred_region
        _
      $region20: #{tpu_custom_call.1} parent=5 // pred_fallthru
        _
      %p81 = scmp.le.s32.totalorder 1, %s9
      %p82 = scmp.lt.s32.totalorder %s9, 3
      %p83 = pnand %p81, %p82
      %p84 = pneg %p83
      // Predicated region
      $region21: #{tpu_custom_call.1} parent=5 // pred_check
        _
      $region22: #{tpu_custom_call.1} parent=5 // pred_check_branch
        %86 = sbr.rel (%p83) target = $region24
      $region23: #{tpu_custom_call.1} parent=5 // pred_region
        %s87 = ssub.s32 %s9, 1
        // Predicated region
        $region25: #{tpu_custom_call.1} parent=23 // pred_check
          %p88 = pneg %p30
        $region26: #{tpu_custom_call.1} parent=23 // pred_check_branch
          %90 = sbr.rel (%p88) target = $region28
        $region27: #{tpu_custom_call.1} parent=23 // pred_region
          %91 = dma.done [#allocation3], 128
        $region28: #{tpu_custom_call.1} parent=23 // pred_fallthru
          _
        %p92 = pneg %p30
        %p93 = pneg %p27
        %p94 = pneg %p51
        %p95 = pneg %p48
        %v96 = vld [vmem:[#allocation2] sm:$0xff]
        %97 = vst [vmem:[#allocation5] sm:$0xff] %v96
        // Predicated region
        $region29: #{tpu_custom_call.1} parent=23 // pred_check
          %p98 = pneg %p48
        $region30: #{tpu_custom_call.1} parent=23 // pred_check_branch
          %100 = sbr.rel (%p98) target = $region32
        $region31: #{tpu_custom_call.1} parent=23 // pred_region
          %s102 = ssub.s32 128, 128
          %103 = vsyncadd [#allocation4], %s102
          %s105 = sshll.u32 [#allocation5], 4
          %s106 = int_to_ptr.vmem [resolvable:$true] %s105
          %108 = dma.vmem_to_hbm [thread:$0]  %s106, 128, %s1, [#allocation4]
        $region32: #{tpu_custom_call.1} parent=23 // pred_fallthru
          _
        // Predicated region
        $region33: #{tpu_custom_call.1} parent=23 // pred_check
          %p109 = pneg %p48
        $region34: #{tpu_custom_call.1} parent=23 // pred_check_branch
          %111 = sbr.rel (%p109) target = $region36
        $region35: #{tpu_custom_call.1} parent=23 // pred_region
          %112 = dma.done [#allocation4], 128
        $region36: #{tpu_custom_call.1} parent=23 // pred_fallthru
          _
      $region24: #{tpu_custom_call.1} parent=5 // pred_fallthru
        _
      %p113 = scmp.le.s32.totalorder 2, %s9
      // Predicated region
      $region37: #{tpu_custom_call.1} parent=5 // pred_check
        %p114 = pneg %p113
      $region38: #{tpu_custom_call.1} parent=5 // pred_check_branch
        %116 = sbr.rel (%p114) target = $region40
      $region39: #{tpu_custom_call.1} parent=5 // pred_region
        %s117 = ssub.s32 %s9, 2
      $region40: #{tpu_custom_call.1} parent=5 // pred_fallthru
        _
    $region6: #{tpu_custom_call.1} parent=1 // loop_footer
      %s13 = sadd.s32 1, %s9
    $region7: #{tpu_custom_call.1} parent=1 // loop_footer_branch
      %8 = sbr.rel target = $region3
    $region8: #{tpu_custom_call.1} parent=1 // loop_exit
      _
    %118 = vsyncpa [#allocation3], 1
    %s119 = scalar_lea.sflag [#allocation3], 1
    %120 = vsyncpa %s119, 1
    %121 = vsyncpa [#allocation4], 1
    %s122 = scalar_lea.sflag [#allocation4], 1
    %123 = vsyncpa %s122, 1

// kernel: forward.1
$region0: #{forward.1}
  #allocation0 [shape = 'u32[]', space=smem, size = 0x4, offset = 0x4, fixed_abs, tag = 'smem constant byte address 0x4 - core index']
  #allocation1 [shape = 'u32[144,128]{1,0:T(1,128)}', space=vmem, size = 0x12000, scoped, tag = 'internal scratch']
  %s0 = inlined_call_operand.vmem [shape: bf16[32,128], index: 0, kind: input, shape index: {}]
  %s1 = inlined_call_operand.vmem [shape: bf16[128,128], index: 1, kind: input, shape index: {}]
  %s2 = inlined_call_operand.vmem [shape: bf16[3,128,128], index: 2, kind: input, shape index: {}]
  %s3 = inlined_call_operand.vmem [shape: bf16[3,128,128], index: 3, kind: input, shape index: {}]
  %s4 = inlined_call_operand.vmem [shape: bf16[128,128], index: 4, kind: input, shape index: {}]
  %s5 = inlined_call_operand.vmem [shape: f32[7,128], index: 5, kind: input, shape index: {}]
  %s6 = inlined_call_operand.vmem [shape: f32[1,128], index: 6, kind: input, shape index: {}]
  %s7 = inlined_call_operand.hbm [shape: f32[32,128], index: 7, kind: output, shape index: {}]
  %s8 = sld [smem:[#allocation0]]
  $region38: #{forward.1} parent=0
    _
  %s10 = ssub.s32 1, %s8
  %s11 = scalar_select 0, %s10, %s8
  $region1: #{forward.1} parent=0
    #allocation2 [shape = 'u8[16384]{0}', space=vmem, size = 0x4000, scoped, tag = 'output window, operand 0, single buffered']
    #allocation3 [shape = 's32[1]{0}', space=sflag, size = 0x4, scoped, tag = 'scoped memory for forward.1']
    %12 = vsyncpa [#allocation3], 0
    // Predicated region
    $region2: #{forward.1} parent=1 // pred_check
      _
    $region3: #{forward.1} parent=1 // pred_check_branch
      %14 = sbr.rel (0) target = $region5
    $region4: #{forward.1} parent=1 // pred_region
      _
    $region5: #{forward.1} parent=1 // pred_fallthru
      _
    // Predicated region
    $region6: #{forward.1} parent=1 // pred_check
      _
    $region7: #{forward.1} parent=1 // pred_check_branch
      %16 = sbr.rel (0) target = $region9
    $region8: #{forward.1} parent=1 // pred_region
      _
    $region9: #{forward.1} parent=1 // pred_fallthru
      _
    // Predicated region
    $region10: #{forward.1} parent=1 // pred_check
      _
    $region11: #{forward.1} parent=1 // pred_check_branch
      %18 = sbr.rel (0) target = $region13
    $region12: #{forward.1} parent=1 // pred_region
      _
    $region13: #{forward.1} parent=1 // pred_fallthru
      _
    // Predicated region
    $region14: #{forward.1} parent=1 // pred_check
      _
    $region15: #{forward.1} parent=1 // pred_check_branch
      %20 = sbr.rel (0) target = $region17
    $region16: #{forward.1} parent=1 // pred_region
      _
    $region17: #{forward.1} parent=1 // pred_fallthru
      _
    // Predicated region
    $region18: #{forward.1} parent=1 // pred_check
      _
    $region19: #{forward.1} parent=1 // pred_check_branch
      %22 = sbr.rel (0) target = $region21
    $region20: #{forward.1} parent=1 // pred_region
      _
    $region21: #{forward.1} parent=1 // pred_fallthru
      _
    // Predicated region
    $region22: #{forward.1} parent=1 // pred_check
      _
    $region23: #{forward.1} parent=1 // pred_check_branch
      %24 = sbr.rel (0) target = $region25
    $region24: #{forward.1} parent=1 // pred_region
      _
    $region25: #{forward.1} parent=1 // pred_fallthru
      _
    // Predicated region
    $region26: #{forward.1} parent=1 // pred_check
      _
    $region27: #{forward.1} parent=1 // pred_check_branch
      %26 = sbr.rel (0) target = $region29
    $region28: #{forward.1} parent=1 // pred_region
      _
    $region29: #{forward.1} parent=1 // pred_fallthru
      _
    %v28 = vld [vmem:[%s5] sm:$0x7f]
    %v29 = vld [vmem:[%s0] sm:$0xf]
    %v30 = vld [vmem:[%s0 + $0x4] sm:$0xf]
    %v31 = vld [vmem:[%s0 + $0x8] sm:$0xf]
    %v32 = vld [vmem:[%s0 + $0xc] sm:$0xf]
    %v33 = vld [vmem:[%s1] sm:$0xf]
    %v34 = vld [vmem:[%s1 + $0x4] sm:$0xf]
    %v35 = vld [vmem:[%s1 + $0x8] sm:$0xf]
    %v36 = vld [vmem:[%s1 + $0xc] sm:$0xf]
    %v37 = vld [vmem:[%s1 + $0x10] sm:$0xf]
    %v38 = vld [vmem:[%s1 + $0x14] sm:$0xf]
    %v39 = vld [vmem:[%s1 + $0x18] sm:$0xf]
    %v40 = vld [vmem:[%s1 + $0x1c] sm:$0xf]
    %v41 = vld [vmem:[%s1 + $0x20] sm:$0xf]
    %v42 = vld [vmem:[%s1 + $0x24] sm:$0xf]
    %v43 = vld [vmem:[%s1 + $0x28] sm:$0xf]
    %v44 = vld [vmem:[%s1 + $0x2c] sm:$0xf]
    %v45 = vld [vmem:[%s1 + $0x30] sm:$0xf]
    %v46 = vld [vmem:[%s1 + $0x34] sm:$0xf]
    %v47 = vld [vmem:[%s1 + $0x38] sm:$0xf]
    %v48 = vld [vmem:[%s1 + $0x3c] sm:$0xf]
    %v49 = vlaneseq
    %v50 = vshrl.u32 %v49, 7
    %v51 = vsub.s32 0, %v50
    %v52 = vrot.slane %v28, %v51
    %v57 = vunpack.c.l.b16 %v29
    %v58 = vunpack.c.l.b16 %v30
    %v59 = vunpack.c.l.b16 %v31
    %v60 = vunpack.c.l.b16 %v32
    %v61 = vpack.c.b16 %v58, %v57
    %v62 = vpack.c.b16 %v60, %v59
    %v81 = vunpack.c.l.b16 %v33
    %v82 = vunpack.c.l.b16 %v34
    %v83 = vunpack.c.l.b16 %v35
    %v84 = vunpack.c.l.b16 %v36
    %v85 = vunpack.c.l.b16 %v37
    %v86 = vunpack.c.l.b16 %v38
    %v87 = vunpack.c.l.b16 %v39
    %v88 = vunpack.c.l.b16 %v40
    %v89 = vunpack.c.l.b16 %v41
    %v90 = vunpack.c.l.b16 %v42
    %v91 = vunpack.c.l.b16 %v43
    %v92 = vunpack.c.l.b16 %v44
    %v93 = vunpack.c.l.b16 %v45
    %v94 = vunpack.c.l.b16 %v46
    %v95 = vunpack.c.l.b16 %v47
    %v96 = vunpack.c.l.b16 %v48
    %v97 = vpack.c.b16 %v82, %v81
    %v98 = vpack.c.b16 %v84, %v83
    %v99 = vpack.c.b16 %v86, %v85
    %v100 = vpack.c.b16 %v88, %v87
    %v101 = vpack.c.b16 %v90, %v89
    %v102 = vpack.c.b16 %v92, %v91
    %v103 = vpack.c.b16 %v94, %v93
    %v104 = vpack.c.b16 %v96, %v95
    %113 = vmatprep.subr.bf16.mxu0 0
    %114 = vmatpush1.bf16.msra.mxu0 %v97
    %115 = vmatprep.subr.bf16.mxu0 0
    %116 = vmatpush1.bf16.msra.mxu0 %v98
    %117 = vmatprep.subr.bf16.mxu0 0
    %118 = vmatpush1.bf16.msra.mxu0 %v99
    %119 = vmatprep.subr.bf16.mxu0 0
    %120 = vmatpush1.bf16.msra.mxu0 %v100
    %121 = vmatprep.subr.bf16.mxu0 0
    %122 = vmatpush1.bf16.msra.mxu0 %v101
    %123 = vmatprep.subr.bf16.mxu0 0
    %124 = vmatpush1.bf16.msra.mxu0 %v102
    %125 = vmatprep.subr.bf16.mxu0 0
    %126 = vmatpush1.bf16.msra.mxu0 %v103
    %127 = vmatprep.subr.bf16.mxu0 0
    %128 = vmatpush1.bf16.msra.mxu0 %v104
    %129 = vmatprep.subr.bf16.mxu0 0
    %130 = vmatpush1.bf16.msra.mxu0 0
    %131 = vmatprep.subr.bf16.mxu0 0
    %132 = vmatpush1.bf16.msra.mxu0 0
    %133 = vmatprep.subr.bf16.mxu0 0
    %134 = vmatpush1.bf16.msra.mxu0 0
    %135 = vmatprep.subr.bf16.mxu0 0
    %136 = vmatpush1.bf16.msra.mxu0 0
    %137 = vmatprep.subr.bf16.mxu0 0
    %138 = vmatpush1.bf16.msra.mxu0 0
    %139 = vmatprep.subr.bf16.mxu0 0
    %140 = vmatpush1.bf16.msra.mxu0 0
    %141 = vmatprep.subr.bf16.mxu0 0
    %142 = vmatpush1.bf16.msra.mxu0 0
    %143 = vmatprep.subr.bf16.mxu0 0
    %144 = vmatpush1.bf16.msra.mxu0 0
    %145 = vmatprep.mubr.bf16.mxu0 0
    %146 = vmatmul.mubr.bf16.gmra.mrb[0].mxu0 %v61
    %v147 = vpop.f32.mrb[0].mxu0
    %v148 = vadd.f32 %v52, %v147
    %v149 = vpop.f32.mrb[0].mxu0
    %v150 = vpop.f32.mrb[0].mxu0
    %v151 = vadd.f32 %v52, %v150
    %v152 = vpop.f32.mrb[0].mxu0
    %153 = vmatprep.mubr.bf16.mxu0 0
    %154 = vmatmul.mubr.bf16.gmra.mrb[0].mxu0 %v62
    %v155 = vpop.f32.mrb[0].mxu0
    %v156 = vadd.f32 %v52, %v155
    %v157 = vpop.f32.mrb[0].mxu0
    %v158 = vpop.f32.mrb[0].mxu0
    %v159 = vadd.f32 %v52, %v158
    %v160 = vpop.f32.mrb[0].mxu0
    %161 = vdwg.mxu0
    %v162 = vmax.f32 %v148, 0.0
    %v163 = vmax.f32 %v151, 0.0
    %v164 = vmax.f32 %v156, 0.0
    %v165 = vmax.f32 %v159, 0.0
    %v166 = vpack.c.bf16 %v163, %v162
    %v167 = vpack.c.bf16 %v165, %v164
    %v168 = vld [vmem:[%s2] sm:$0xf]
    %v169 = vld [vmem:[%s2 + $0x4] sm:$0xf]
    %v170 = vld [vmem:[%s2 + $0x8] sm:$0xf]
    %v171 = vld [vmem:[%s2 + $0xc] sm:$0xf]
    %v172 = vld [vmem:[%s2 + $0x10] sm:$0xf]
    %v173 = vld [vmem:[%s2 + $0x14] sm:$0xf]
    %v174 = vld [vmem:[%s2 + $0x18] sm:$0xf]
    %v175 = vld [vmem:[%s2 + $0x1c] sm:$0xf]
    %v176 = vld [vmem:[%s2 + $0x20] sm:$0xf]
    %v177 = vld [vmem:[%s2 + $0x24] sm:$0xf]
    %v178 = vld [vmem:[%s2 + $0x28] sm:$0xf]
    %v179 = vld [vmem:[%s2 + $0x2c] sm:$0xf]
    %v180 = vld [vmem:[%s2 + $0x30] sm:$0xf]
    %v181 = vld [vmem:[%s2 + $0x34] sm:$0xf]
    %v182 = vld [vmem:[%s2 + $0x38] sm:$0xf]
    %v183 = vld [vmem:[%s2 + $0x3c] sm:$0xf]
    %v184 = vlaneseq
    %v185 = vshrl.u32 %v184, 7
    %v186 = vsub.s32 1, %v185
    %v187 = vrot.slane %v28, %v186
    %v204 = vunpack.c.l.b16 %v168
    %v205 = vunpack.c.l.b16 %v169
    %v206 = vunpack.c.l.b16 %v170
    %v207 = vunpack.c.l.b16 %v171
    %v208 = vunpack.c.l.b16 %v172
    %v209 = vunpack.c.l.b16 %v173
    %v210 = vunpack.c.l.b16 %v174
    %v211 = vunpack.c.l.b16 %v175
    %v212 = vunpack.c.l.b16 %v176
    %v213 = vunpack.c.l.b16 %v177
    %v214 = vunpack.c.l.b16 %v178
    %v215 = vunpack.c.l.b16 %v179
    %v216 = vunpack.c.l.b16 %v180
    %v217 = vunpack.c.l.b16 %v181
    %v218 = vunpack.c.l.b16 %v182
    %v219 = vunpack.c.l.b16 %v183
    %v220 = vpack.c.b16 %v205, %v204
    %v221 = vpack.c.b16 %v207, %v206
    %v222 = vpack.c.b16 %v209, %v208
    %v223 = vpack.c.b16 %v211, %v210
    %v224 = vpack.c.b16 %v213, %v212
    %v225 = vpack.c.b16 %v215, %v214
    %v226 = vpack.c.b16 %v217, %v216
    %v227 = vpack.c.b16 %v219, %v218
    %236 = vmatprep.subr.bf16.mxu0 0
    %237 = vmatpush1.bf16.msra.mxu0 %v220
    %238 = vmatprep.subr.bf16.mxu0 0
    %239 = vmatpush1.bf16.msra.mxu0 %v221
    %240 = vmatprep.subr.bf16.mxu0 0
    %241 = vmatpush1.bf16.msra.mxu0 %v222
    %242 = vmatprep.subr.bf16.mxu0 0
    %243 = vmatpush1.bf16.msra.mxu0 %v223
    %244 = vmatprep.subr.bf16.mxu0 0
    %245 = vmatpush1.bf16.msra.mxu0 %v224
    %246 = vmatprep.subr.bf16.mxu0 0
    %247 = vmatpush1.bf16.msra.mxu0 %v225
    %248 = vmatprep.subr.bf16.mxu0 0
    %249 = vmatpush1.bf16.msra.mxu0 %v226
    %250 = vmatprep.subr.bf16.mxu0 0
    %251 = vmatpush1.bf16.msra.mxu0 %v227
    %252 = vmatprep.subr.bf16.mxu0 0
    %253 = vmatpush1.bf16.msra.mxu0 0
    %254 = vmatprep.subr.bf16.mxu0 0
    %255 = vmatpush1.bf16.msra.mxu0 0
    %256 = vmatprep.subr.bf16.mxu0 0
    %257 = vmatpush1.bf16.msra.mxu0 0
    %258 = vmatprep.subr.bf16.mxu0 0
    %259 = vmatpush1.bf16.msra.mxu0 0
    %260 = vmatprep.subr.bf16.mxu0 0
    %261 = vmatpush1.bf16.msra.mxu0 0
    %262 = vmatprep.subr.bf16.mxu0 0
    %263 = vmatpush1.bf16.msra.mxu0 0
    %264 = vmatprep.subr.bf16.mxu0 0
    %265 = vmatpush1.bf16.msra.mxu0 0
    %266 = vmatprep.subr.bf16.mxu0 0
    %267 = vmatpush1.bf16.msra.mxu0 0
    %268 = vmatprep.mubr.bf16.mxu0 0
    %269 = vmatmul.mubr.bf16.gmra.mrb[0].mxu0 %v166
    %v270 = vpop.f32.mrb[0].mxu0
    %v271 = vadd.f32 %v187, %v270
    %v272 = vpop.f32.mrb[0].mxu0
    %v273 = vpop.f32.mrb[0].mxu0
    %v274 = vadd.f32 %v187, %v273
    %v275 = vpop.f32.mrb[0].mxu0
    %276 = vmatprep.mubr.bf16.mxu0 0
    %277 = vmatmul.mubr.bf16.gmra.mrb[0].mxu0 %v167
    %v278 = vpop.f32.mrb[0].mxu0
    %v279 = vadd.f32 %v187, %v278
    %v280 = vpop.f32.mrb[0].mxu0
    %v281 = vpop.f32.mrb[0].mxu0
    %v282 = vadd.f32 %v187, %v281
    %v283 = vpop.f32.mrb[0].mxu0
    %284 = vdwg.mxu0
    %v285 = vmax.f32 %v271, 0.0
    %v286 = vmax.f32 %v274, 0.0
    %v287 = vmax.f32 %v279, 0.0
    %v288 = vmax.f32 %v282, 0.0
    %v289 = vpack.c.bf16 %v286, %v285
    %v290 = vpack.c.bf16 %v288, %v287
    %v291 = vld [vmem:[%s3] sm:$0xf]
    %v292 = vld [vmem:[%s3 + $0x4] sm:$0xf]
    %v293 = vld [vmem:[%s3 + $0x8] sm:$0xf]
    %v294 = vld [vmem:[%s3 + $0xc] sm:$0xf]
    %v295 = vld [vmem:[%s3 + $0x10] sm:$0xf]
    %v296 = vld [vmem:[%s3 + $0x14] sm:$0xf]
    %v297 = vld [vmem:[%s3 + $0x18] sm:$0xf]
    %v298 = vld [vmem:[%s3 + $0x1c] sm:$0xf]
    %v299 = vld [vmem:[%s3 + $0x20] sm:$0xf]
    %v300 = vld [vmem:[%s3 + $0x24] sm:$0xf]
    %v301 = vld [vmem:[%s3 + $0x28] sm:$0xf]
    %v302 = vld [vmem:[%s3 + $0x2c] sm:$0xf]
    %v303 = vld [vmem:[%s3 + $0x30] sm:$0xf]
    %v304 = vld [vmem:[%s3 + $0x34] sm:$0xf]
    %v305 = vld [vmem:[%s3 + $0x38] sm:$0xf]
    %v306 = vld [vmem:[%s3 + $0x3c] sm:$0xf]
    %v323 = vunpack.c.l.b16 %v291
    %v324 = vunpack.c.l.b16 %v292
    %v325 = vunpack.c.l.b16 %v293
    %v326 = vunpack.c.l.b16 %v294
    %v327 = vunpack.c.l.b16 %v295
    %v328 = vunpack.c.l.b16 %v296
    %v329 = vunpack.c.l.b16 %v297
    %v330 = vunpack.c.l.b16 %v298
    %v331 = vunpack.c.l.b16 %v299
    %v332 = vunpack.c.l.b16 %v300
    %v333 = vunpack.c.l.b16 %v301
    %v334 = vunpack.c.l.b16 %v302
    %v335 = vunpack.c.l.b16 %v303
    %v336 = vunpack.c.l.b16 %v304
    %v337 = vunpack.c.l.b16 %v305
    %v338 = vunpack.c.l.b16 %v306
    %v339 = vpack.c.b16 %v324, %v323
    %v340 = vpack.c.b16 %v326, %v325
    %v341 = vpack.c.b16 %v328, %v327
    %v342 = vpack.c.b16 %v330, %v329
    %v343 = vpack.c.b16 %v332, %v331
    %v344 = vpack.c.b16 %v334, %v333
    %v345 = vpack.c.b16 %v336, %v335
    %v346 = vpack.c.b16 %v338, %v337
    %355 = vmatprep.subr.bf16.mxu0 0
    %356 = vmatpush1.bf16.msra.mxu0 %v339
    %357 = vmatprep.subr.bf16.mxu0 0
    %358 = vmatpush1.bf16.msra.mxu0 %v340
    %359 = vmatprep.subr.bf16.mxu0 0
    %360 = vmatpush1.bf16.msra.mxu0 %v341
    %361 = vmatprep.subr.bf16.mxu0 0
    %362 = vmatpush1.bf16.msra.mxu0 %v342
    %363 = vmatprep.subr.bf16.mxu0 0
    %364 = vmatpush1.bf16.msra.mxu0 %v343
    %365 = vmatprep.subr.bf16.mxu0 0
    %366 = vmatpush1.bf16.msra.mxu0 %v344
    %367 = vmatprep.subr.bf16.mxu0 0
    %368 = vmatpush1.bf16.msra.mxu0 %v345
    %369 = vmatprep.subr.bf16.mxu0 0
    %370 = vmatpush1.bf16.msra.mxu0 %v346
    %371 = vmatprep.subr.bf16.mxu0 0
    %372 = vmatpush1.bf16.msra.mxu0 0
    %373 = vmatprep.subr.bf16.mxu0 0
    %374 = vmatpush1.bf16.msra.mxu0 0
    %375 = vmatprep.subr.bf16.mxu0 0
    %376 = vmatpush1.bf16.msra.mxu0 0
    %377 = vmatprep.subr.bf16.mxu0 0
    %378 = vmatpush1.bf16.msra.mxu0 0
    %379 = vmatprep.subr.bf16.mxu0 0
    %380 = vmatpush1.bf16.msra.mxu0 0
    %381 = vmatprep.subr.bf16.mxu0 0
    %382 = vmatpush1.bf16.msra.mxu0 0
    %383 = vmatprep.subr.bf16.mxu0 0
    %384 = vmatpush1.bf16.msra.mxu0 0
    %385 = vmatprep.subr.bf16.mxu0 0
    %386 = vmatpush1.bf16.msra.mxu0 0
    %387 = vmatprep.mubr.bf16.mxu0 0
    %388 = vmatmul.mubr.bf16.gmra.mrb[0].mxu0 %v289
    %v389 = vpop.f32.mrb[0].mxu0
    %v390 = vadd.f32 0.0, %v389
    %v391 = vpop.f32.mrb[0].mxu0
    %v392 = vpop.f32.mrb[0].mxu0
    %v393 = vadd.f32 0.0, %v392
    %v394 = vpop.f32.mrb[0].mxu0
    %395 = vmatprep.mubr.bf16.mxu0 0
    %396 = vmatmul.mubr.bf16.gmra.mrb[0].mxu0 %v290
    %v397 = vpop.f32.mrb[0].mxu0
    %v398 = vadd.f32 0.0, %v397
    %v399 = vpop.f32.mrb[0].mxu0
    %v400 = vpop.f32.mrb[0].mxu0
    %v401 = vadd.f32 0.0, %v400
    %v402 = vpop.f32.mrb[0].mxu0
    %403 = vdwg.mxu0
    %v404 = vadd.f32 %v162, %v390
    %v405 = vadd.f32 %v163, %v393
    %v406 = vadd.f32 %v164, %v398
    %v407 = vadd.f32 %v165, %v401
    %v408 = vlaneseq
    %v409 = vshrl.u32 %v408, 7
    %v410 = vsub.s32 4, %v409
    %v411 = vrot.slane %v28, %v410
    %v412 = vadd.f32 %v404, %v411
    %v413 = vadd.f32 %v405, %v411
    %v414 = vadd.f32 %v406, %v411
    %v415 = vadd.f32 %v407, %v411
    %v416 = vpack.c.bf16 %v413, %v412
    %v417 = vpack.c.bf16 %v415, %v414
    %s418 = scalar_lea.vmem %s2, 64
    %v419 = vld [vmem:[%s418] sm:$0xf]
    %v420 = vld [vmem:[%s418 + $0x4] sm:$0xf]
    %v421 = vld [vmem:[%s418 + $0x8] sm:$0xf]
    %v422 = vld [vmem:[%s418 + $0xc] sm:$0xf]
    %v423 = vld [vmem:[%s418 + $0x10] sm:$0xf]
    %v424 = vld [vmem:[%s418 + $0x14] sm:$0xf]
    %v425 = vld [vmem:[%s418 + $0x18] sm:$0xf]
    %v426 = vld [vmem:[%s418 + $0x1c] sm:$0xf]
    %v427 = vld [vmem:[%s418 + $0x20] sm:$0xf]
    %v428 = vld [vmem:[%s418 + $0x24] sm:$0xf]
    %v429 = vld [vmem:[%s418 + $0x28] sm:$0xf]
    %v430 = vld [vmem:[%s418 + $0x2c] sm:$0xf]
    %v431 = vld [vmem:[%s418 + $0x30] sm:$0xf]
    %v432 = vld [vmem:[%s418 + $0x34] sm:$0xf]
    %v433 = vld [vmem:[%s418 + $0x38] sm:$0xf]
    %v434 = vld [vmem:[%s418 + $0x3c] sm:$0xf]
    %v435 = vlaneseq
    %v436 = vshrl.u32 %v435, 7
    %v437 = vsub.s32 2, %v436
    %v438 = vrot.slane %v28, %v437
    %v455 = vunpack.c.l.b16 %v419
    %v456 = vunpack.c.l.b16 %v420
    %v457 = vunpack.c.l.b16 %v421
    %v458 = vunpack.c.l.b16 %v422
    %v459 = vunpack.c.l.b16 %v423
    %v460 = vunpack.c.l.b16 %v424
    %v461 = vunpack.c.l.b16 %v425
    %v462 = vunpack.c.l.b16 %v426
    %v463 = vunpack.c.l.b16 %v427
    %v464 = vunpack.c.l.b16 %v428
    %v465 = vunpack.c.l.b16 %v429
    %v466 = vunpack.c.l.b16 %v430
    %v467 = vunpack.c.l.b16 %v431
    %v468 = vunpack.c.l.b16 %v432
    %v469 = vunpack.c.l.b16 %v433
    %v470 = vunpack.c.l.b16 %v434
    %v471 = vpack.c.b16 %v456, %v455
    %v472 = vpack.c.b16 %v458, %v457
    %v473 = vpack.c.b16 %v460, %v459
    %v474 = vpack.c.b16 %v462, %v461
    %v475 = vpack.c.b16 %v464, %v463
    %v476 = vpack.c.b16 %v466, %v465
    %v477 = vpack.c.b16 %v468, %v467
    %v478 = vpack.c.b16 %v470, %v469
    %487 = vmatprep.subr.bf16.mxu0 0
    %488 = vmatpush1.bf16.msra.mxu0 %v471
    %489 = vmatprep.subr.bf16.mxu0 0
    %490 = vmatpush1.bf16.msra.mxu0 %v472
    %491 = vmatprep.subr.bf16.mxu0 0
    %492 = vmatpush1.bf16.msra.mxu0 %v473
    %493 = vmatprep.subr.bf16.mxu0 0
    %494 = vmatpush1.bf16.msra.mxu0 %v474
    %495 = vmatprep.subr.bf16.mxu0 0
    %496 = vmatpush1.bf16.msra.mxu0 %v475
    %497 = vmatprep.subr.bf16.mxu0 0
    %498 = vmatpush1.bf16.msra.mxu0 %v476
    %499 = vmatprep.subr.bf16.mxu0 0
    %500 = vmatpush1.bf16.msra.mxu0 %v477
    %501 = vmatprep.subr.bf16.mxu0 0
    %502 = vmatpush1.bf16.msra.mxu0 %v478
    %503 = vmatprep.subr.bf16.mxu0 0
    %504 = vmatpush1.bf16.msra.mxu0 0
    %505 = vmatprep.subr.bf16.mxu0 0
    %506 = vmatpush1.bf16.msra.mxu0 0
    %507 = vmatprep.subr.bf16.mxu0 0
    %508 = vmatpush1.bf16.msra.mxu0 0
    %509 = vmatprep.subr.bf16.mxu0 0
    %510 = vmatpush1.bf16.msra.mxu0 0
    %511 = vmatprep.subr.bf16.mxu0 0
    %512 = vmatpush1.bf16.msra.mxu0 0
    %513 = vmatprep.subr.bf16.mxu0 0
    %514 = vmatpush1.bf16.msra.mxu0 0
    %515 = vmatprep.subr.bf16.mxu0 0
    %516 = vmatpush1.bf16.msra.mxu0 0
    %517 = vmatprep.subr.bf16.mxu0 0
    %518 = vmatpush1.bf16.msra.mxu0 0
    %519 = vmatprep.mubr.bf16.mxu0 0
    %520 = vmatmul.mubr.bf16.gmra.mrb[0].mxu0 %v416
    %v521 = vpop.f32.mrb[0].mxu0
    %v522 = vadd.f32 %v438, %v521
    %v523 = vpop.f32.mrb[0].mxu0
    %v524 = vpop.f32.mrb[0].mxu0
    %v525 = vadd.f32 %v438, %v524
    %v526 = vpop.f32.mrb[0].mxu0
    %527 = vmatprep.mubr.bf16.mxu0 0
    %528 = vmatmul.mubr.bf16.gmra.mrb[0].mxu0 %v417
    %v529 = vpop.f32.mrb[0].mxu0
    %v530 = vadd.f32 %v438, %v529
    %v531 = vpop.f32.mrb[0].mxu0
    %v532 = vpop.f32.mrb[0].mxu0
    %v533 = vadd.f32 %v438, %v532
    %v534 = vpop.f32.mrb[0].mxu0
    %535 = vdwg.mxu0
    %v536 = vmax.f32 %v522, 0.0
    %v537 = vmax.f32 %v525, 0.0
    %v538 = vmax.f32 %v530, 0.0
    %v539 = vmax.f32 %v533, 0.0
    %v540 = vpack.c.bf16 %v537, %v536
    %v541 = vpack.c.bf16 %v539, %v538
    %s542 = scalar_lea.vmem %s3, 64
    %v543 = vld [vmem:[%s542] sm:$0xf]
    %v544 = vld [vmem:[%s542 + $0x4] sm:$0xf]
    %v545 = vld [vmem:[%s542 + $0x8] sm:$0xf]
    %v546 = vld [vmem:[%s542 + $0xc] sm:$0xf]
    %v547 = vld [vmem:[%s542 + $0x10] sm:$0xf]
    %v548 = vld [vmem:[%s542 + $0x14] sm:$0xf]
    %v549 = vld [vmem:[%s542 + $0x18] sm:$0xf]
    %v550 = vld [vmem:[%s542 + $0x1c] sm:$0xf]
    %v551 = vld [vmem:[%s542 + $0x20] sm:$0xf]
    %v552 = vld [vmem:[%s542 + $0x24] sm:$0xf]
    %v553 = vld [vmem:[%s542 + $0x28] sm:$0xf]
    %v554 = vld [vmem:[%s542 + $0x2c] sm:$0xf]
    %v555 = vld [vmem:[%s542 + $0x30] sm:$0xf]
    %v556 = vld [vmem:[%s542 + $0x34] sm:$0xf]
    %v557 = vld [vmem:[%s542 + $0x38] sm:$0xf]
    %v558 = vld [vmem:[%s542 + $0x3c] sm:$0xf]
    %v575 = vunpack.c.l.b16 %v543
    %v576 = vunpack.c.l.b16 %v544
    %v577 = vunpack.c.l.b16 %v545
    %v578 = vunpack.c.l.b16 %v546
    %v579 = vunpack.c.l.b16 %v547
    %v580 = vunpack.c.l.b16 %v548
    %v581 = vunpack.c.l.b16 %v549
    %v582 = vunpack.c.l.b16 %v550
    %v583 = vunpack.c.l.b16 %v551
    %v584 = vunpack.c.l.b16 %v552
    %v585 = vunpack.c.l.b16 %v553
    %v586 = vunpack.c.l.b16 %v554
    %v587 = vunpack.c.l.b16 %v555
    %v588 = vunpack.c.l.b16 %v556
    %v589 = vunpack.c.l.b16 %v557
    %v590 = vunpack.c.l.b16 %v558
    %v591 = vpack.c.b16 %v576, %v575
    %v592 = vpack.c.b16 %v578, %v577
    %v593 = vpack.c.b16 %v580, %v579
    %v594 = vpack.c.b16 %v582, %v581
    %v595 = vpack.c.b16 %v584, %v583
    %v596 = vpack.c.b16 %v586, %v585
    %v597 = vpack.c.b16 %v588, %v587
    %v598 = vpack.c.b16 %v590, %v589
    %607 = vmatprep.subr.bf16.mxu0 0
    %608 = vmatpush1.bf16.msra.mxu0 %v591
    %609 = vmatprep.subr.bf16.mxu0 0
    %610 = vmatpush1.bf16.msra.mxu0 %v592
    %611 = vmatprep.subr.bf16.mxu0 0
    %612 = vmatpush1.bf16.msra.mxu0 %v593
    %613 = vmatprep.subr.bf16.mxu0 0
    %614 = vmatpush1.bf16.msra.mxu0 %v594
    %615 = vmatprep.subr.bf16.mxu0 0
    %616 = vmatpush1.bf16.msra.mxu0 %v595
    %617 = vmatprep.subr.bf16.mxu0 0
    %618 = vmatpush1.bf16.msra.mxu0 %v596
    %619 = vmatprep.subr.bf16.mxu0 0
    %620 = vmatpush1.bf16.msra.mxu0 %v597
    %621 = vmatprep.subr.bf16.mxu0 0
    %622 = vmatpush1.bf16.msra.mxu0 %v598
    %623 = vmatprep.subr.bf16.mxu0 0
    %624 = vmatpush1.bf16.msra.mxu0 0
    %625 = vmatprep.subr.bf16.mxu0 0
    %626 = vmatpush1.bf16.msra.mxu0 0
    %627 = vmatprep.subr.bf16.mxu0 0
    %628 = vmatpush1.bf16.msra.mxu0 0
    %629 = vmatprep.subr.bf16.mxu0 0
    %630 = vmatpush1.bf16.msra.mxu0 0
    %631 = vmatprep.subr.bf16.mxu0 0
    %632 = vmatpush1.bf16.msra.mxu0 0
    %633 = vmatprep.subr.bf16.mxu0 0
    %634 = vmatpush1.bf16.msra.mxu0 0
    %635 = vmatprep.subr.bf16.mxu0 0
    %636 = vmatpush1.bf16.msra.mxu0 0
    %637 = vmatprep.subr.bf16.mxu0 0
    %638 = vmatpush1.bf16.msra.mxu0 0
    %639 = vmatprep.mubr.bf16.mxu0 0
    %640 = vmatmul.mubr.bf16.gmra.mrb[0].mxu0 %v540
    %v641 = vpop.f32.mrb[0].mxu0
    %v642 = vadd.f32 0.0, %v641
    %v643 = vpop.f32.mrb[0].mxu0
    %v644 = vpop.f32.mrb[0].mxu0
    %v645 = vadd.f32 0.0, %v644
    %v646 = vpop.f32.mrb[0].mxu0
    %647 = vmatprep.mubr.bf16.mxu0 0
    %648 = vmatmul.mubr.bf16.gmra.mrb[0].mxu0 %v541
    %v649 = vpop.f32.mrb[0].mxu0
    %v650 = vadd.f32 0.0, %v649
    %v651 = vpop.f32.mrb[0].mxu0
    %v652 = vpop.f32.mrb[0].mxu0
    %v653 = vadd.f32 0.0, %v652
    %v654 = vpop.f32.mrb[0].mxu0
    %655 = vdwg.mxu0
    %v656 = vadd.f32 %v412, %v642
    %v657 = vadd.f32 %v413, %v645
    %v658 = vadd.f32 %v414, %v650
    %v659 = vadd.f32 %v415, %v653
    %v660 = vlaneseq
    %v661 = vshrl.u32 %v660, 7
    %v662 = vsub.s32 5, %v661
    %v663 = vrot.slane %v28, %v662
    %v664 = vadd.f32 %v656, %v663
    %v665 = vadd.f32 %v657, %v663
    %v666 = vadd.f32 %v658, %v663
    %v667 = vadd.f32 %v659, %v663
    %v668 = vpack.c.bf16 %v665, %v664
    %v669 = vpack.c.bf16 %v667, %v666
    %s670 = scalar_lea.vmem %s2, 128
    %v671 = vld [vmem:[%s670] sm:$0xf]
    %v672 = vld [vmem:[%s670 + $0x4] sm:$0xf]
    %v673 = vld [vmem:[%s670 + $0x8] sm:$0xf]
    %v674 = vld [vmem:[%s670 + $0xc] sm:$0xf]
    %v675 = vld [vmem:[%s670 + $0x10] sm:$0xf]
    %v676 = vld [vmem:[%s670 + $0x14] sm:$0xf]
    %v677 = vld [vmem:[%s670 + $0x18] sm:$0xf]
    %v678 = vld [vmem:[%s670 + $0x1c] sm:$0xf]
    %v679 = vld [vmem:[%s670 + $0x20] sm:$0xf]
    %v680 = vld [vmem:[%s670 + $0x24] sm:$0xf]
    %v681 = vld [vmem:[%s670 + $0x28] sm:$0xf]
    %v682 = vld [vmem:[%s670 + $0x2c] sm:$0xf]
    %v683 = vld [vmem:[%s670 + $0x30] sm:$0xf]
    %v684 = vld [vmem:[%s670 + $0x34] sm:$0xf]
    %v685 = vld [vmem:[%s670 + $0x38] sm:$0xf]
    %v686 = vld [vmem:[%s670 + $0x3c] sm:$0xf]
    %v687 = vlaneseq
    %v688 = vshrl.u32 %v687, 7
    %v689 = vsub.s32 3, %v688
    %v690 = vrot.slane %v28, %v689
    %v707 = vunpack.c.l.b16 %v671
    %v708 = vunpack.c.l.b16 %v672
    %v709 = vunpack.c.l.b16 %v673
    %v710 = vunpack.c.l.b16 %v674
    %v711 = vunpack.c.l.b16 %v675
    %v712 = vunpack.c.l.b16 %v676
    %v713 = vunpack.c.l.b16 %v677
    %v714 = vunpack.c.l.b16 %v678
    %v715 = vunpack.c.l.b16 %v679
    %v716 = vunpack.c.l.b16 %v680
    %v717 = vunpack.c.l.b16 %v681
    %v718 = vunpack.c.l.b16 %v682
    %v719 = vunpack.c.l.b16 %v683
    %v720 = vunpack.c.l.b16 %v684
    %v721 = vunpack.c.l.b16 %v685
    %v722 = vunpack.c.l.b16 %v686
    %v723 = vpack.c.b16 %v708, %v707
    %v724 = vpack.c.b16 %v710, %v709
    %v725 = vpack.c.b16 %v712, %v711
    %v726 = vpack.c.b16 %v714, %v713
    %v727 = vpack.c.b16 %v716, %v715
    %v728 = vpack.c.b16 %v718, %v717
    %v729 = vpack.c.b16 %v720, %v719
    %v730 = vpack.c.b16 %v722, %v721
    %739 = vmatprep.subr.bf16.mxu0 0
    %740 = vmatpush1.bf16.msra.mxu0 %v723
    %741 = vmatprep.subr.bf16.mxu0 0
    %742 = vmatpush1.bf16.msra.mxu0 %v724
    %743 = vmatprep.subr.bf16.mxu0 0
    %744 = vmatpush1.bf16.msra.mxu0 %v725
    %745 = vmatprep.subr.bf16.mxu0 0
    %746 = vmatpush1.bf16.msra.mxu0 %v726
    %747 = vmatprep.subr.bf16.mxu0 0
    %748 = vmatpush1.bf16.msra.mxu0 %v727
    %749 = vmatprep.subr.bf16.mxu0 0
    %750 = vmatpush1.bf16.msra.mxu0 %v728
    %751 = vmatprep.subr.bf16.mxu0 0
    %752 = vmatpush1.bf16.msra.mxu0 %v729
    %753 = vmatprep.subr.bf16.mxu0 0
    %754 = vmatpush1.bf16.msra.mxu0 %v730
    %755 = vmatprep.subr.bf16.mxu0 0
    %756 = vmatpush1.bf16.msra.mxu0 0
    %757 = vmatprep.subr.bf16.mxu0 0
    %758 = vmatpush1.bf16.msra.mxu0 0
    %759 = vmatprep.subr.bf16.mxu0 0
    %760 = vmatpush1.bf16.msra.mxu0 0
    %761 = vmatprep.subr.bf16.mxu0 0
    %762 = vmatpush1.bf16.msra.mxu0 0
    %763 = vmatprep.subr.bf16.mxu0 0
    %764 = vmatpush1.bf16.msra.mxu0 0
    %765 = vmatprep.subr.bf16.mxu0 0
    %766 = vmatpush1.bf16.msra.mxu0 0
    %767 = vmatprep.subr.bf16.mxu0 0
    %768 = vmatpush1.bf16.msra.mxu0 0
    %769 = vmatprep.subr.bf16.mxu0 0
    %770 = vmatpush1.bf16.msra.mxu0 0
    %771 = vmatprep.mubr.bf16.mxu0 0
    %772 = vmatmul.mubr.bf16.gmra.mrb[0].mxu0 %v668
    %v773 = vpop.f32.mrb[0].mxu0
    %v774 = vadd.f32 %v690, %v773
    %v775 = vpop.f32.mrb[0].mxu0
    %v776 = vpop.f32.mrb[0].mxu0
    %v777 = vadd.f32 %v690, %v776
    %v778 = vpop.f32.mrb[0].mxu0
    %779 = vmatprep.mubr.bf16.mxu0 0
    %780 = vmatmul.mubr.bf16.gmra.mrb[0].mxu0 %v669
    %v781 = vpop.f32.mrb[0].mxu0
    %v782 = vadd.f32 %v690, %v781
    %v783 = vpop.f32.mrb[0].mxu0
    %v784 = vpop.f32.mrb[0].mxu0
    %v785 = vadd.f32 %v690, %v784
    %v786 = vpop.f32.mrb[0].mxu0
    %787 = vdwg.mxu0
    %v788 = vmax.f32 %v774, 0.0
    %v789 = vmax.f32 %v777, 0.0
    %v790 = vmax.f32 %v782, 0.0
    %v791 = vmax.f32 %v785, 0.0
    %v792 = vpack.c.bf16 %v789, %v788
    %v793 = vpack.c.bf16 %v791, %v790
    %s794 = scalar_lea.vmem %s3, 128
    %v795 = vld [vmem:[%s794] sm:$0xf]
    %v796 = vld [vmem:[%s794 + $0x4] sm:$0xf]
    %v797 = vld [vmem:[%s794 + $0x8] sm:$0xf]
    %v798 = vld [vmem:[%s794 + $0xc] sm:$0xf]
    %v799 = vld [vmem:[%s794 + $0x10] sm:$0xf]
    %v800 = vld [vmem:[%s794 + $0x14] sm:$0xf]
    %v801 = vld [vmem:[%s794 + $0x18] sm:$0xf]
    %v802 = vld [vmem:[%s794 + $0x1c] sm:$0xf]
    %v803 = vld [vmem:[%s794 + $0x20] sm:$0xf]
    %v804 = vld [vmem:[%s794 + $0x24] sm:$0xf]
    %v805 = vld [vmem:[%s794 + $0x28] sm:$0xf]
    %v806 = vld [vmem:[%s794 + $0x2c] sm:$0xf]
    %v807 = vld [vmem:[%s794 + $0x30] sm:$0xf]
    %v808 = vld [vmem:[%s794 + $0x34] sm:$0xf]
    %v809 = vld [vmem:[%s794 + $0x38] sm:$0xf]
    %v810 = vld [vmem:[%s794 + $0x3c] sm:$0xf]
    %v827 = vunpack.c.l.b16 %v795
    %v828 = vunpack.c.l.b16 %v796
    %v829 = vunpack.c.l.b16 %v797
    %v830 = vunpack.c.l.b16 %v798
    %v831 = vunpack.c.l.b16 %v799
    %v832 = vunpack.c.l.b16 %v800
    %v833 = vunpack.c.l.b16 %v801
    %v834 = vunpack.c.l.b16 %v802
    %v835 = vunpack.c.l.b16 %v803
    %v836 = vunpack.c.l.b16 %v804
    %v837 = vunpack.c.l.b16 %v805
    %v838 = vunpack.c.l.b16 %v806
    %v839 = vunpack.c.l.b16 %v807
    %v840 = vunpack.c.l.b16 %v808
    %v841 = vunpack.c.l.b16 %v809
    %v842 = vunpack.c.l.b16 %v810
    %v843 = vpack.c.b16 %v828, %v827
    %v844 = vpack.c.b16 %v830, %v829
    %v845 = vpack.c.b16 %v832, %v831
    %v846 = vpack.c.b16 %v834, %v833
    %v847 = vpack.c.b16 %v836, %v835
    %v848 = vpack.c.b16 %v838, %v837
    %v849 = vpack.c.b16 %v840, %v839
    %v850 = vpack.c.b16 %v842, %v841
    %859 = vmatprep.subr.bf16.mxu0 0
    %860 = vmatpush1.bf16.msra.mxu0 %v843
    %861 = vmatprep.subr.bf16.mxu0 0
    %862 = vmatpush1.bf16.msra.mxu0 %v844
    %863 = vmatprep.subr.bf16.mxu0 0
    %864 = vmatpush1.bf16.msra.mxu0 %v845
    %865 = vmatprep.subr.bf16.mxu0 0
    %866 = vmatpush1.bf16.msra.mxu0 %v846
    %867 = vmatprep.subr.bf16.mxu0 0
    %868 = vmatpush1.bf16.msra.mxu0 %v847
    %869 = vmatprep.subr.bf16.mxu0 0
    %870 = vmatpush1.bf16.msra.mxu0 %v848
    %871 = vmatprep.subr.bf16.mxu0 0
    %872 = vmatpush1.bf16.msra.mxu0 %v849
    %873 = vmatprep.subr.bf16.mxu0 0
    %874 = vmatpush1.bf16.msra.mxu0 %v850
    %875 = vmatprep.subr.bf16.mxu0 0
    %876 = vmatpush1.bf16.msra.mxu0 0
    %877 = vmatprep.subr.bf16.mxu0 0
    %878 = vmatpush1.bf16.msra.mxu0 0
    %879 = vmatprep.subr.bf16.mxu0 0
    %880 = vmatpush1.bf16.msra.mxu0 0
    %881 = vmatprep.subr.bf16.mxu0 0
    %882 = vmatpush1.bf16.msra.mxu0 0
    %883 = vmatprep.subr.bf16.mxu0 0
    %884 = vmatpush1.bf16.msra.mxu0 0
    %885 = vmatprep.subr.bf16.mxu0 0
    %886 = vmatpush1.bf16.msra.mxu0 0
    %887 = vmatprep.subr.bf16.mxu0 0
    %888 = vmatpush1.bf16.msra.mxu0 0
    %889 = vmatprep.subr.bf16.mxu0 0
    %890 = vmatpush1.bf16.msra.mxu0 0
    %891 = vmatprep.mubr.bf16.mxu0 0
    %892 = vmatmul.mubr.bf16.gmra.mrb[0].mxu0 %v792
    %v893 = vpop.f32.mrb[0].mxu0
    %v894 = vadd.f32 0.0, %v893
    %v895 = vpop.f32.mrb[0].mxu0
    %v896 = vpop.f32.mrb[0].mxu0
    %v897 = vadd.f32 0.0, %v896
    %v898 = vpop.f32.mrb[0].mxu0
    %899 = vmatprep.mubr.bf16.mxu0 0
    %900 = vmatmul.mubr.bf16.gmra.mrb[0].mxu0 %v793
    %v901 = vpop.f32.mrb[0].mxu0
    %v902 = vadd.f32 0.0, %v901
    %v903 = vpop.f32.mrb[0].mxu0
    %v904 = vpop.f32.mrb[0].mxu0
    %v905 = vadd.f32 0.0, %v904
    %v906 = vpop.f32.mrb[0].mxu0
    %907 = vdwg.mxu0
    %v908 = vadd.f32 %v664, %v894
    %v909 = vadd.f32 %v665, %v897
    %v910 = vadd.f32 %v666, %v902
    %v911 = vadd.f32 %v667, %v905
    %v912 = vlaneseq
    %v913 = vshrl.u32 %v912, 7
    %v914 = vsub.s32 6, %v913
    %v915 = vrot.slane %v28, %v914
    %v916 = vadd.f32 %v908, %v915
    %v917 = vadd.f32 %v909, %v915
    %v918 = vadd.f32 %v910, %v915
    %v919 = vadd.f32 %v911, %v915
    %v920 = vpack.c.bf16 %v917, %v916
    %v921 = vpack.c.bf16 %v919, %v918
    %v922 = vld [vmem:[%s4] sm:$0xf]
    %v923 = vld [vmem:[%s4 + $0x4] sm:$0xf]
    %v924 = vld [vmem:[%s4 + $0x8] sm:$0xf]
    %v925 = vld [vmem:[%s4 + $0xc] sm:$0xf]
    %v926 = vld [vmem:[%s4 + $0x10] sm:$0xf]
    %v927 = vld [vmem:[%s4 + $0x14] sm:$0xf]
    %v928 = vld [vmem:[%s4 + $0x18] sm:$0xf]
    %v929 = vld [vmem:[%s4 + $0x1c] sm:$0xf]
    %v930 = vld [vmem:[%s4 + $0x20] sm:$0xf]
    %v931 = vld [vmem:[%s4 + $0x24] sm:$0xf]
    %v932 = vld [vmem:[%s4 + $0x28] sm:$0xf]
    %v933 = vld [vmem:[%s4 + $0x2c] sm:$0xf]
    %v934 = vld [vmem:[%s4 + $0x30] sm:$0xf]
    %v935 = vld [vmem:[%s4 + $0x34] sm:$0xf]
    %v936 = vld [vmem:[%s4 + $0x38] sm:$0xf]
    %v937 = vld [vmem:[%s4 + $0x3c] sm:$0xf]
    %v938 = vld [vmem:[%s6] sm:$0x1]
    %v940 = vlaneseq
    %v941 = vshrl.u32 %v940, 7
    %v942 = vsub.s32 0, %v941
    %v943 = vrot.slane %v938, %v942
    %v961 = vunpack.c.l.b16 %v922
    %v962 = vunpack.c.l.b16 %v923
    %v963 = vunpack.c.l.b16 %v924
    %v964 = vunpack.c.l.b16 %v925
    %v965 = vunpack.c.l.b16 %v926
    %v966 = vunpack.c.l.b16 %v927
    %v967 = vunpack.c.l.b16 %v928
    %v968 = vunpack.c.l.b16 %v929
    %v969 = vunpack.c.l.b16 %v930
    %v970 = vunpack.c.l.b16 %v931
    %v971 = vunpack.c.l.b16 %v932
    %v972 = vunpack.c.l.b16 %v933
    %v973 = vunpack.c.l.b16 %v934
    %v974 = vunpack.c.l.b16 %v935
    %v975 = vunpack.c.l.b16 %v936
    %v976 = vunpack.c.l.b16 %v937
    %v977 = vpack.c.b16 %v962, %v961
    %v978 = vpack.c.b16 %v964, %v963
    %v979 = vpack.c.b16 %v966, %v965
    %v980 = vpack.c.b16 %v968, %v967
    %v981 = vpack.c.b16 %v970, %v969
    %v982 = vpack.c.b16 %v972, %v971
    %v983 = vpack.c.b16 %v974, %v973
    %v984 = vpack.c.b16 %v976, %v975
    %993 = vmatprep.subr.bf16.mxu0 0
    %994 = vmatpush1.bf16.msra.mxu0 %v977
    %995 = vmatprep.subr.bf16.mxu0 0
    %996 = vmatpush1.bf16.msra.mxu0 %v978
    %997 = vmatprep.subr.bf16.mxu0 0
    %998 = vmatpush1.bf16.msra.mxu0 %v979
    %999 = vmatprep.subr.bf16.mxu0 0
    %1000 = vmatpush1.bf16.msra.mxu0 %v980
    %1001 = vmatprep.subr.bf16.mxu0 0
    %1002 = vmatpush1.bf16.msra.mxu0 %v981
    %1003 = vmatprep.subr.bf16.mxu0 0
    %1004 = vmatpush1.bf16.msra.mxu0 %v982
    %1005 = vmatprep.subr.bf16.mxu0 0
    %1006 = vmatpush1.bf16.msra.mxu0 %v983
    %1007 = vmatprep.subr.bf16.mxu0 0
    %1008 = vmatpush1.bf16.msra.mxu0 %v984
    %1009 = vmatprep.subr.bf16.mxu0 0
    %1010 = vmatpush1.bf16.msra.mxu0 0
    %1011 = vmatprep.subr.bf16.mxu0 0
    %1012 = vmatpush1.bf16.msra.mxu0 0
    %1013 = vmatprep.subr.bf16.mxu0 0
    %1014 = vmatpush1.bf16.msra.mxu0 0
    %1015 = vmatprep.subr.bf16.mxu0 0
    %1016 = vmatpush1.bf16.msra.mxu0 0
    %1017 = vmatprep.subr.bf16.mxu0 0
    %1018 = vmatpush1.bf16.msra.mxu0 0
    %1019 = vmatprep.subr.bf16.mxu0 0
    %1020 = vmatpush1.bf16.msra.mxu0 0
    %1021 = vmatprep.subr.bf16.mxu0 0
    %1022 = vmatpush1.bf16.msra.mxu0 0
    %1023 = vmatprep.subr.bf16.mxu0 0
    %1024 = vmatpush1.bf16.msra.mxu0 0
    %1025 = vmatprep.mubr.bf16.mxu0 0
    %1026 = vmatmul.mubr.bf16.gmra.mrb[0].mxu0 %v920
    %v1027 = vpop.f32.mrb[0].mxu0
    %v1028 = vadd.f32 %v943, %v1027
    %v1029 = vpop.f32.mrb[0].mxu0
    %v1030 = vpop.f32.mrb[0].mxu0
    %v1031 = vadd.f32 %v943, %v1030
    %v1032 = vpop.f32.mrb[0].mxu0
    %1033 = vmatprep.mubr.bf16.mxu0 0
    %1034 = vmatmul.mubr.bf16.gmra.mrb[0].mxu0 %v921
    %v1035 = vpop.f32.mrb[0].mxu0
    %v1036 = vadd.f32 %v943, %v1035
    %v1037 = vpop.f32.mrb[0].mxu0
    %v1038 = vpop.f32.mrb[0].mxu0
    %v1039 = vadd.f32 %v943, %v1038
    %v1040 = vpop.f32.mrb[0].mxu0
    %1041 = vdwg.mxu0
    %1042 = vst [vmem:[#allocation2] sm:$0xff] %v1028
    %1043 = vst [vmem:[#allocation2 + $0x8] sm:$0xff] %v1031
    %1044 = vst [vmem:[#allocation2 + $0x10] sm:$0xff] %v1036
    %1045 = vst [vmem:[#allocation2 + $0x18] sm:$0xff] %v1039
    // Predicated region
    $region30: #{forward.1} parent=1 // pred_check
      _
    $region31: #{forward.1} parent=1 // pred_check_branch
      %1047 = sbr.rel (0) target = $region33
    $region32: #{forward.1} parent=1 // pred_region
      %s1049 = ssub.s32 512, 512
      %1050 = vsyncadd [#allocation3], %s1049
      %s1051 = sshll.u32 [#allocation2], 4
      %s1052 = int_to_ptr.vmem [resolvable:$true] %s1051
      %1057 = dma.vmem_to_hbm [thread:$0]  %s1052, 512, %s7, [#allocation3], 128, 128, 8
    $region33: #{forward.1} parent=1 // pred_fallthru
      _
    // Predicated region
    $region34: #{forward.1} parent=1 // pred_check
      _
    $region35: #{forward.1} parent=1 // pred_check_branch
      %1059 = sbr.rel (0) target = $region37
    $region36: #{forward.1} parent=1 // pred_region
      %1060 = dma.done [#allocation3], 512
    $region37: #{forward.1} parent=1 // pred_fallthru
      _
    %1061 = vsyncpa [#allocation3], 1

</llo_original>
